<compile_context>
chip_gen: v7x
topology: tpu7x:2x2x1
jax: 0.10.0
libtpu: 0.0.40
codegen_flags: <defaults>
</compile_context>

<pallas_src>
import jax
import jax.numpy as jnp
from jax.experimental import pallas as pl
from jax.experimental.pallas import tpu as pltpu


def _cdiv(a, b):
    return -(-a // b)


# Budget (bytes) for the double-buffered input+output blocks held in VMEM.
# 16 MiB sits comfortably inside v7x's 64 MiB physical VMEM (and trivially
# inside v5e/v6e's 128 MiB) while being large enough to reach the ~85%
# HBM-roofline plateau for big inputs.
_VMEM_BLOCK_BUDGET_BYTES = 16 * 1024 * 1024
# Scoped VMEM limit requested from Mosaic: above the 16/32 MiB scoped
# defaults, with headroom under v7x's 64 MiB physical capacity.
_VMEM_LIMIT_BYTES = 48 * 1024 * 1024


def _choose_tile(num_planes, h, w, hp, wp, itemsize):
    """How many (H, W) -> (Hp, Wp) planes each grid step processes."""
    per_plane = (h * w + hp * wp) * itemsize               # one plane, in + out
    max_tile = max(1, _VMEM_BLOCK_BUDGET_BYTES // (2 * per_plane))  # x2: dbl buffer
    tile = min(max_tile, num_planes)
    # Keep at least ~4 grid steps when possible so the "parallel" axis can be
    # sharded across both TensorCores on v7x (2 TCs/chip).
    if num_planes >= 4:
        tile = min(tile, _cdiv(num_planes, 4))
    return max(1, tile)


def _make_pad_kernel(pad, h, w, hp, wp):
    def kernel(x_ref, o_ref):
        tile = o_ref.shape[0]
        if pad == 0:
            o_ref[...] = x_ref[...]
            return
        dt = o_ref.dtype
        # Zero only the border slabs (interior is written exactly once below).
        o_ref[:, :pad, :] = jnp.zeros((tile, pad, wp), dt)               # top
        o_ref[:, pad + h:, :] = jnp.zeros((tile, pad, wp), dt)           # bottom
        o_ref[:, pad:pad + h, :pad] = jnp.zeros((tile, h, pad), dt)      # left
        o_ref[:, pad:pad + h, pad + w:] = jnp.zeros((tile, h, pad), dt)  # right
        # Interior copy.
        o_ref[:, pad:pad + h, pad:pad + w] = x_ref[...]
    return kernel


def pad_layer_pallas(x, pad):
    """Zero-pad the last two dims of x (N, C, H, W) by `pad` on each side."""
    if pad < 0:
        raise ValueError("pad must be non-negative")
    N, C, H, W = x.shape
    Hp, Wp = H + 2 * pad, W + 2 * pad
    G = N * C

    tile = _choose_tile(G, H, W, Hp, Wp, jnp.dtype(x.dtype).itemsize)
    G_pad = _cdiv(G, tile) * tile

    x_flat = x.reshape(G, H, W)
    if G_pad != G:
        # Round the plane axis up to a multiple of TILE so every grid block is
        # full; filler planes are sliced off after the call.
        filler = jnp.zeros((G_pad - G, H, W), x.dtype)
        x_flat = jnp.concatenate([x_flat, filler], axis=0)

    out_flat = pl.pallas_call(
        _make_pad_kernel(pad, H, W, Hp, Wp),
        out_shape=jax.ShapeDtypeStruct((G_pad, Hp, Wp), x.dtype),
        grid_spec=pltpu.PrefetchScalarGridSpec(
            num_scalar_prefetch=0,
            grid=(G_pad // tile,),
            # Block last-two dims equal the full array dims, so the (8, 128)
            # divisibility constraint does not apply.
            in_specs=[pl.BlockSpec((tile, H, W), lambda i: (i, 0, 0))],
            out_specs=pl.BlockSpec((tile, Hp, Wp), lambda i: (i, 0, 0)),
        ),
        compiler_params=pltpu.CompilerParams(
            dimension_semantics=("parallel",),
            vmem_limit_bytes=_VMEM_LIMIT_BYTES,
        ),
    )(x_flat)

    return out_flat[:G].reshape(N, C, Hp, Wp)


def _reference(x, pad):
    # Same semantics as F.pad(input, [pad]*4): zero-pad last two dims.
    return jnp.pad(x, ((0, 0), (0, 0), (pad, pad), (pad, pad)))


if __name__ == "__main__":
    key = jax.random.PRNGKey(0)
    k0, k1 = jax.random.split(key)

    # Main check (shapes implied by the module usage).
    N, C, H, W = 2, 4, 16, 16
    pad = 2
    x = jax.random.normal(k0, (N, C, H, W), dtype=jnp.float32)
    out = jax.block_until_ready(pad_layer_pallas(x, pad))
    ref = _reference(x, pad)
    assert out.shape == (N, C, H + 2 * pad, W + 2 * pad)
    assert out.dtype == x.dtype
    assert jnp.array_equal(out, ref), "mismatch vs reference zero-pad"

    # Secondary checks: plane count not a multiple of TILE (ragged path) and
    # pad == 0 passthrough.
    x2 = jax.random.normal(k1, (1, 7, 16, 16), dtype=jnp.float32)
    out2 = jax.block_until_ready(pad_layer_pallas(x2, 1))
    assert jnp.array_equal(out2, _reference(x2, 1)), "ragged-tile mismatch"

    out3 = jax.block_until_ready(pad_layer_pallas(x2, 0))
    assert jnp.array_equal(out3, x2), "pad=0 mismatch"

    print("KERNEL_OK")
</pallas_src>

<mosaic_0001>
module attributes {stable_mosaic.version = 11 : i64} {
  func.func @kernel(%arg0: i32, %arg1: memref<2x16x16xf32, #tpu.memory_space<vmem>>, %arg2: memref<2x20x20xf32, #tpu.memory_space<vmem>>) attributes {dimension_semantics = [#tpu.dimension_semantics<parallel>], iteration_bounds = array<i64: 4>, scalar_prefetch = 0 : i64, scratch_operands = 0 : i64, tpu.core_type = #tpu.core_type<tc>, window_params = [{transform_indices = @transform_0, window_bounds = array<i64: 2, 16, 16>}, {transform_indices = @transform_1, window_bounds = array<i64: 2, 20, 20>}]} {
    %cst = arith.constant 0.000000e+00 : f32
    %0 = vector.broadcast %cst : f32 to vector<2x2x20xf32>
    %c0 = arith.constant 0 : index
    %c0_0 = arith.constant 0 : index
    %c0_1 = arith.constant 0 : index
    %1 = vector.load %arg2[%c0, %c0_0, %c0_1] : memref<2x20x20xf32, #tpu.memory_space<vmem>>, vector<2x2x20xf32>
    tpu.vector_store %arg2[%c0, %c0_0, %c0_1], %0 {strides = array<i32>} : memref<2x20x20xf32, #tpu.memory_space<vmem>>, vector<2x2x20xf32>,
    %cst_2 = arith.constant 0.000000e+00 : f32
    %2 = vector.broadcast %cst_2 : f32 to vector<2x2x20xf32>
    %c0_3 = arith.constant 0 : index
    %c18 = arith.constant 18 : index
    %c0_4 = arith.constant 0 : index
    %3 = vector.load %arg2[%c0_3, %c18, %c0_4] : memref<2x20x20xf32, #tpu.memory_space<vmem>>, vector<2x2x20xf32>
    tpu.vector_store %arg2[%c0_3, %c18, %c0_4], %2 {strides = array<i32>} : memref<2x20x20xf32, #tpu.memory_space<vmem>>, vector<2x2x20xf32>,
    %cst_5 = arith.constant 0.000000e+00 : f32
    %4 = vector.broadcast %cst_5 : f32 to vector<2x16x2xf32>
    %c0_6 = arith.constant 0 : index
    %c2 = arith.constant 2 : index
    %c0_7 = arith.constant 0 : index
    %5 = vector.load %arg2[%c0_6, %c2, %c0_7] : memref<2x20x20xf32, #tpu.memory_space<vmem>>, vector<2x16x2xf32>
    tpu.vector_store %arg2[%c0_6, %c2, %c0_7], %4 {strides = array<i32>} : memref<2x20x20xf32, #tpu.memory_space<vmem>>, vector<2x16x2xf32>,
    %cst_8 = arith.constant 0.000000e+00 : f32
    %6 = vector.broadcast %cst_8 : f32 to vector<2x16x2xf32>
    %c0_9 = arith.constant 0 : index
    %c2_10 = arith.constant 2 : index
    %c18_11 = arith.constant 18 : index
    %7 = vector.load %arg2[%c0_9, %c2_10, %c18_11] : memref<2x20x20xf32, #tpu.memory_space<vmem>>, vector<2x16x2xf32>
    tpu.vector_store %arg2[%c0_9, %c2_10, %c18_11], %6 {strides = array<i32>} : memref<2x20x20xf32, #tpu.memory_space<vmem>>, vector<2x16x2xf32>,
    %c0_12 = arith.constant 0 : index
    %c0_13 = arith.constant 0 : index
    %c0_14 = arith.constant 0 : index
    %8 = vector.load %arg1[%c0_12, %c0_13, %c0_14] : memref<2x16x16xf32, #tpu.memory_space<vmem>>, vector<2x16x16xf32>
    %c0_15 = arith.constant 0 : index
    %c2_16 = arith.constant 2 : index
    %c2_17 = arith.constant 2 : index
    %9 = vector.load %arg2[%c0_15, %c2_16, %c2_17] : memref<2x20x20xf32, #tpu.memory_space<vmem>>, vector<2x16x16xf32>
    tpu.vector_store %arg2[%c0_15, %c2_16, %c2_17], %8 {strides = array<i32>} : memref<2x20x20xf32, #tpu.memory_space<vmem>>, vector<2x16x16xf32>,
    return
  }
  func.func @transform_0(%arg0: i32) -> (i32, i32, i32) {
    %c0_i32 = arith.constant 0 : i32
    %c0_i32_0 = arith.constant 0 : i32
    %c0_i32_1 = arith.constant 0 : i32
    return %arg0, %c0_i32, %c0_i32_0 : i32, i32, i32
  }
  func.func @transform_1(%arg0: i32) -> (i32, i32, i32) {
    %c0_i32 = arith.constant 0 : i32
    %c0_i32_0 = arith.constant 0 : i32
    %c0_i32_1 = arith.constant 0 : i32
    return %arg0, %c0_i32, %c0_i32_0 : i32, i32, i32
  }
}

</mosaic_0001>

<llo_original>
// kernel: tpu_custom_call.1
$region0: #{tpu_custom_call.1}
  #allocation0 [shape = 'u32[]', space=smem, size = 0x4, offset = 0x4, fixed_abs, tag = 'smem constant byte address 0x4 - core index']
  #allocation1 [shape = 'u32[144,128]{1,0:T(1,128)}', space=vmem, size = 0x12000, scoped, tag = 'internal scratch']
  %s0 = inlined_call_operand.hbm [shape: f32[8,16,16], index: 0, kind: input, shape index: {}]
  %s1 = inlined_call_operand.vmem [shape: f32[8,20,20], index: 1, kind: output, shape index: {}]
  %s2 = sld [smem:[#allocation0]]
  $region41: #{tpu_custom_call.1} parent=0
    _
  %s4 = ssub.s32 1, %s2
  %s5 = scalar_select 0, %s4, %s2
  $region1: #{tpu_custom_call.1} parent=0
    #allocation2 [shape = 'u8[32768]{0}', space=vmem, size = 0x8000, scoped, tag = 'input window, operand 0']
    #allocation3 [shape = 's32[2]{0}', space=sflag, size = 0x8, scoped, tag = 'scoped memory for tpu_custom_call.1']
    %6 = vsyncpa [#allocation3], 0
    %s7 = scalar_lea.sflag [#allocation3], 1
    %8 = vsyncpa %s7, 0
    loop: start=0, step=1, limit=6
    $region2: #{tpu_custom_call.1} parent=1 // loop_pre_header
      _
    $region3: #{tpu_custom_call.1} parent=1 // loop_header
      %s10 = sphi 0, %s14
      %p11 = scmp.ge.s32.totalorder %s10, 6
      %s20 = sphi 0, %s22
      %s23 = sphi 0, %s20
      %s24 = sphi 0, %s23
      %s40 = sphi 0, %s24
      %s46 = sphi 0, %s48
      %s49 = sphi 0, %s46
      %s50 = sphi 0, %s49
      %s66 = sphi 0, %s50
    $region4: #{tpu_custom_call.1} parent=1 // loop_header_branch
      %13 = sbr.rel (%p11) target = $region8
    $region5: #{tpu_custom_call.1} parent=1 // loop_body
      %s15 = ssub.s32 %s10, 1
      %s16 = ssub.s32 %s10, 2
      %s17 = sadd.s32 %s10, 1
      %s18 = ssub.s32 %s10, %s17
      %p19 = scmp.eq.s32.totalorder %s18, 0
      %s21 = sadd.s32 %s20, 1
      %s22 = scalar_select %p19, %s20, %s21
      %p25 = pneg %p19
      %p26 = scmp.eq.s32.totalorder %s10, 3
      %p27 = por %p25, %p26
      %p28 = scmp.ne.s32.totalorder %s20, %s23
      %p29 = scmp.eq.s32.totalorder %s10, 0
      %p30 = por %p28, %p29
      %p31 = scmp.ne.s32.totalorder %s20, %s23
      %p32 = scmp.eq.s32.totalorder %s15, 3
      %p33 = por %p31, %p32
      %p34 = scmp.ne.s32.totalorder %s23, %s24
      %p35 = scmp.eq.s32.totalorder %s15, 0
      %p36 = por %p34, %p35
      %p37 = scmp.ne.s32.totalorder %s23, %s24
      %p38 = scmp.eq.s32.totalorder %s16, 3
      %p39 = por %p37, %p38
      %p41 = scmp.ne.s32.totalorder %s24, %s40
      %p42 = scmp.eq.s32.totalorder %s16, 0
      %p43 = por %p41, %p42
      %s44 = ssub.s32 %s10, %s17
      %p45 = scmp.eq.s32.totalorder %s44, 0
      %s47 = sadd.s32 %s46, 1
      %s48 = scalar_select %p45, %s46, %s47
      %p51 = pneg %p45
      %p52 = scmp.eq.s32.totalorder %s10, 3
      %p53 = por %p51, %p52
      %p54 = scmp.ne.s32.totalorder %s46, %s49
      %p55 = scmp.eq.s32.totalorder %s10, 0
      %p56 = por %p54, %p55
      %p57 = scmp.ne.s32.totalorder %s46, %s49
      %p58 = scmp.eq.s32.totalorder %s15, 3
      %p59 = por %p57, %p58
      %p60 = scmp.ne.s32.totalorder %s49, %s50
      %p61 = scmp.eq.s32.totalorder %s15, 0
      %p62 = por %p60, %p61
      %p63 = scmp.ne.s32.totalorder %s49, %s50
      %p64 = scmp.eq.s32.totalorder %s16, 3
      %p65 = por %p63, %p64
      %p67 = scmp.ne.s32.totalorder %s50, %s66
      %p68 = scmp.eq.s32.totalorder %s16, 0
      %p69 = por %p67, %p68
      %p70 = scmp.le.s32.totalorder 1, %s10
      %p71 = scmp.lt.s32.totalorder %s10, 5
      %p72 = pnand %p70, %p71
      %p73 = pneg %p72
      // Predicated region
      $region9: #{tpu_custom_call.1} parent=5 // pred_check
        _
      $region10: #{tpu_custom_call.1} parent=5 // pred_check_branch
        %75 = sbr.rel (%p72) target = $region12
      $region11: #{tpu_custom_call.1} parent=5 // pred_region
        %s76 = ssub.s32 %s10, 1
      $region12: #{tpu_custom_call.1} parent=5 // pred_fallthru
        _
      %p77 = scmp.lt.s32.totalorder %s10, 4
      // Predicated region
      $region13: #{tpu_custom_call.1} parent=5 // pred_check
        %p78 = pneg %p77
      $region14: #{tpu_custom_call.1} parent=5 // pred_check_branch
        %80 = sbr.rel (%p78) target = $region16
      $region15: #{tpu_custom_call.1} parent=5 // pred_region
        // Predicated region
        $region17: #{tpu_custom_call.1} parent=15 // pred_check
          %p81 = pneg %p30
        $region18: #{tpu_custom_call.1} parent=15 // pred_check_branch
          %83 = sbr.rel (%p81) target = $region20
        $region19: #{tpu_custom_call.1} parent=15 // pred_region
          %s84 = sand.u32 %s20, 1
          %s85 = scalar_lea.sflag [#allocation3], %s84
          %s86 = sand.u32 %s20, 1
          %s87 = smul.addr %s86, 32
          %s88 = scalar_lea.vmem [#allocation2], %s87
          %s89 = smul.u32 2, %s10
          %s91 = ssub.s32 512, 512
          %92 = vsyncadd %s85, %s91
          %s93 = smul.addr %s89, 2
          %s94 = smul.addr %s93, 128
          %s95 = scalar_lea.hbm %s0, %s94
          %s96 = sshll.u32 %s88, 4
          %s97 = int_to_ptr.vmem [resolvable:$true] %s96
          %102 = dma.hbm_to_vmem [thread:$0]  %s95, 512, %s97, %s85, 128, 128, 8
        $region20: #{tpu_custom_call.1} parent=15 // pred_fallthru
          _
      $region16: #{tpu_custom_call.1} parent=5 // pred_fallthru
        _
      %p103 = scmp.le.s32.totalorder 1, %s10
      %p104 = scmp.lt.s32.totalorder %s10, 5
      %p105 = pnand %p103, %p104
      %p106 = pneg %p105
      // Predicated region
      $region21: #{tpu_custom_call.1} parent=5 // pred_check
        _
      $region22: #{tpu_custom_call.1} parent=5 // pred_check_branch
        %108 = sbr.rel (%p105) target = $region24
      $region23: #{tpu_custom_call.1} parent=5 // pred_region
        %s109 = ssub.s32 %s10, 1
        %s110 = sand.u32 %s23, 1
        %s111 = scalar_lea.sflag [#allocation3], %s110
        %s112 = sand.u32 %s23, 1
        %s113 = smul.addr %s112, 32
        %s114 = scalar_lea.vmem [#allocation2], %s113
        // Predicated region
        $region25: #{tpu_custom_call.1} parent=23 // pred_check
          %p115 = pneg %p36
        $region26: #{tpu_custom_call.1} parent=23 // pred_check_branch
          %117 = sbr.rel (%p115) target = $region28
        $region27: #{tpu_custom_call.1} parent=23 // pred_region
          %118 = dma.done %s111, 512
        $region28: #{tpu_custom_call.1} parent=23 // pred_fallthru
          _
        %s119 = sand.u32 %s23, 1
        %s120 = scalar_lea.sflag [#allocation3], %s119
        %s121 = sand.u32 %s23, 1
        %s122 = smul.addr %s121, 32
        %s123 = scalar_lea.vmem [#allocation2], %s122
        %p124 = pneg %p36
        %p125 = pneg %p33
        %p126 = pneg %p62
        %p127 = pneg %p59
        %s128 = smul.u32 2, %s15
        %p129 = scmp.lt.s32.totalorder %s128, 7
        %s130 = scalar_select %p129, %s128, 7
        %s131 = smul.addr %s130, 3
        %s132 = smul.addr %s131, 8
        %s133 = scalar_lea.vmem %s1, %s132
        %s134 = smul.u32 2, %s15
        %s135 = smul.u32 2, %s15
        %p136 = scmp.lt.s32.totalorder %s135, 7
        %s137 = scalar_select %p136, %s135, 7
        %s138 = smul.addr %s137, 3
        %s139 = smul.addr %s138, 8
        %s140 = scalar_lea.vmem %s1, %s139
        %s141 = smul.u32 2, %s15
        %vm142 = vcmask 156672
        %143 = vst.msk [vmem:[%s140] sm:$0x3] %vm142, 0.0
        %144 = vst.msk [vmem:[%s140 + $0x18] sm:$0x3] %vm142, 0.0
        %145 = vst.msk [vmem:[%s140 + $0x12] sm:$0x3] %vm142, 0.0
        %146 = vst.msk [vmem:[%s140 + $0x2a] sm:$0x3] %vm142, 0.0
        %vm147 = vcmask 15360
        %148 = vst.msk [vmem:[%s140 + $0x2] sm:$0xff] %vm147, 0.0
        %149 = vst.msk [vmem:[%s140 + $0xa] sm:$0xff] %vm147, 0.0
        %150 = vst.msk [vmem:[%s140 + $0x1a] sm:$0xff] %vm147, 0.0
        %151 = vst.msk [vmem:[%s140 + $0x22] sm:$0xff] %vm147, 0.0
        %vm152 = vcmask 162960
        %153 = vst.msk [vmem:[%s140 + $0x2] sm:$0xff] %vm152, 0.0
        %154 = vst.msk [vmem:[%s140 + $0xa] sm:$0xff] %vm152, 0.0
        %155 = vst.msk [vmem:[%s140 + $0x1a] sm:$0xff] %vm152, 0.0
        %156 = vst.msk [vmem:[%s140 + $0x22] sm:$0xff] %vm152, 0.0
        %v157 = vld [vmem:[%s114] sm:$0xff]
        %v158 = vld [vmem:[%s114 + $0x8] sm:$0xff]
        %v159 = vld [vmem:[%s114 + $0x10] sm:$0xff]
        %v160 = vld [vmem:[%s114 + $0x18] sm:$0xff]
        %165 = vrot.lane.b32.xlu0 %v157, 2
        %v166 = vpop.permute.xlu0 %165
        %167 = vrot.lane.b32.xlu0 %v158, 2
        %v168 = vpop.permute.xlu0 %167
        %169 = vrot.lane.b32.xlu0 %v159, 2
        %v170 = vpop.permute.xlu0 %169
        %171 = vrot.lane.b32.xlu0 %v160, 2
        %v172 = vpop.permute.xlu0 %171
        %vm177 = vcmask 146448
        %178 = vst.msk [vmem:[%s140 + $0x2] sm:$0xff] %vm177, %v166
        %179 = vst.msk [vmem:[%s140 + $0xa] sm:$0xff] %vm177, %v168
        %180 = vst.msk [vmem:[%s140 + $0x1a] sm:$0xff] %vm177, %v170
        %181 = vst.msk [vmem:[%s140 + $0x22] sm:$0xff] %vm177, %v172
        %s182 = smul.u32 2, %s15
        %p183 = scmp.lt.s32.totalorder %s182, 7
        %s184 = scalar_select %p183, %s182, 7
        %s185 = smul.addr %s184, 3
        %s186 = smul.addr %s185, 8
        %s187 = scalar_lea.vmem %s1, %s186
        // Predicated region
        $region29: #{tpu_custom_call.1} parent=23 // pred_check
          %p188 = pneg %p59
        $region30: #{tpu_custom_call.1} parent=23 // pred_check_branch
          %190 = sbr.rel (%p188) target = $region32
        $region31: #{tpu_custom_call.1} parent=23 // pred_region
          %s191 = smul.u32 2, %s15
        $region32: #{tpu_custom_call.1} parent=23 // pred_fallthru
          _
      $region24: #{tpu_custom_call.1} parent=5 // pred_fallthru
        _
      %p192 = scmp.le.s32.totalorder 2, %s10
      // Predicated region
      $region33: #{tpu_custom_call.1} parent=5 // pred_check
        %p193 = pneg %p192
      $region34: #{tpu_custom_call.1} parent=5 // pred_check_branch
        %195 = sbr.rel (%p193) target = $region36
      $region35: #{tpu_custom_call.1} parent=5 // pred_region
        %s196 = ssub.s32 %s10, 2
        // Predicated region
        $region37: #{tpu_custom_call.1} parent=35 // pred_check
          %p197 = pneg %p65
        $region38: #{tpu_custom_call.1} parent=35 // pred_check_branch
          %199 = sbr.rel (%p197) target = $region40
        $region39: #{tpu_custom_call.1} parent=35 // pred_region
          %s200 = smul.u32 2, %s16
          %p201 = scmp.lt.s32.totalorder %s200, 7
          %s202 = scalar_select %p201, %s200, 7
          %s203 = smul.addr %s202, 3
          %s204 = smul.addr %s203, 8
          %s205 = scalar_lea.vmem %s1, %s204
        $region40: #{tpu_custom_call.1} parent=35 // pred_fallthru
          _
      $region36: #{tpu_custom_call.1} parent=5 // pred_fallthru
        _
    $region6: #{tpu_custom_call.1} parent=1 // loop_footer
      %s14 = sadd.s32 1, %s10
    $region7: #{tpu_custom_call.1} parent=1 // loop_footer_branch
      %9 = sbr.rel target = $region3
    $region8: #{tpu_custom_call.1} parent=1 // loop_exit
      _
    %206 = vsyncpa [#allocation3], 1
    %s207 = scalar_lea.sflag [#allocation3], 1
    %208 = vsyncpa %s207, 1

</llo_original>
